<compile_context>
chip_gen: v7x
topology: tpu7x:2x2x1
jax: 0.10.0
libtpu: 0.0.40
codegen_flags: <defaults>
</compile_context>

<pallas_src>
import functools
from typing import NamedTuple

import jax
import jax.numpy as jnp
from jax.experimental import pallas as pl
from jax.experimental.pallas import tpu as pltpu

LANE = 128      # pad hidden feature dims to the vreg lane width
SUBLANE = 8     # batch tiles rounded to sublane multiples
MAX_TM = 2048   # max rows per grid step (amortizes ~0.35us/step overhead)


def _cdiv(a, b):
    return (a + b - 1) // b


def _round_up(x, m):
    return ((x + m - 1) // m) * m


class PackedNet(NamedTuple):
    W: jax.Array          # (L, 128, 128) pre-transposed (in, out), zero-padded
    B: jax.Array          # (L, 1, 128)   zero-padded biases
    in_features: int
    out_features: int


# ---------------------------------------------------------------------------
# Fused kernel: whole layer stack, one grid step = one batch tile.
#   x_ref: (tm, in_features)  activations at natural width
#   w_ref: (L, 128, 128)      weights, pre-transposed to (in, out), zero-padded
#   b_ref: (L, 1, 128)        biases, zero-padded
#   o_ref: (tm, out_features) final activation at true width
# ---------------------------------------------------------------------------
def _fused_mlp_kernel(x_ref, w_ref, b_ref, o_ref, *,
                      num_layers, in_features, out_features):
    h = x_ref[...]                                   # (tm, in_features)
    for l in range(num_layers):                      # static unrolled layer loop
        w_l = w_ref[l]                               # (128, 128)
        if l == 0:
            w_l = w_l[:in_features, :]               # narrow K for un-padded input
        y = jnp.dot(h, w_l, preferred_element_type=jnp.float32)  # MXU
        y = y + b_ref[l]                             # (1,128) broadcast
        h = 0.5 * jnp.tanh(0.5 * y) + 0.5            # sigmoid, 1 EUP op/elem
        # Padded columns: y=0 -> h=0.5; next layer's zero weight ROWS for those
        # columns cancel them, so the chain stays exact.
    o_ref[...] = h[:, :out_features].astype(o_ref.dtype)   # true-width store


# ---------------------------------------------------------------------------
# Host-side packing: (out,in) PyTorch-style weights -> padded (in,out) stack.
# Call ONCE at init (not per forward).
# ---------------------------------------------------------------------------
def pack_params(params, in_features=16, dtype=jnp.float32):
    L = len(params)
    W = jnp.zeros((L, LANE, LANE), dtype=dtype)
    B = jnp.zeros((L, 1, LANE), dtype=dtype)
    last = in_features
    for l, (w, b) in enumerate(params):
        out_f, in_f = w.shape
        assert in_f == last, "layer chain mismatch"
        # TODO(synk): tile the contraction/output dims for layer widths > 128.
        assert in_f <= LANE and out_f <= LANE
        W = W.at[l, :in_f, :out_f].set(jnp.asarray(w, dtype).T)  # pre-transposed
        B = B.at[l, 0, :out_f].set(jnp.asarray(b, dtype))
        last = out_f
    return PackedNet(W, B, in_features, last)


# ---------------------------------------------------------------------------
# Batch tiling: minimize row padding, cap tile size, split into >=2 grid
# steps whenever possible so v7x's two TensorCores both get work.
# ---------------------------------------------------------------------------
def _choose_tiling(batch):
    min_steps = 2 if batch > SUBLANE else 1
    steps = max(min_steps, _cdiv(batch, MAX_TM))
    tm = _round_up(_cdiv(batch, steps), SUBLANE)
    steps = max(_cdiv(batch, tm), 1)
    return steps, tm


# ---------------------------------------------------------------------------
# Forward pass: one pallas_call for the whole network.
# ---------------------------------------------------------------------------
@functools.partial(jax.jit, static_argnames=("in_features", "out_features"))
def _forward_impl(W, Bias, x, *, in_features, out_features):
    batch = x.shape[0]
    L = W.shape[0]

    steps, tm = _choose_tiling(batch)
    batch_pad = steps * tm

    x32 = x.astype(jnp.float32)
    if batch_pad != batch:
        x32 = jnp.pad(x32, ((0, batch_pad - batch), (0, 0)))

    out = pl.pallas_call(
        functools.partial(
            _fused_mlp_kernel,
            num_layers=L,
            in_features=in_features,
            out_features=out_features,
        ),
        out_shape=jax.ShapeDtypeStruct((batch_pad, out_features), jnp.float32),
        grid=(steps,),
        in_specs=[
            # Natural-width batch tile (last dim == full array dim -> legal).
            pl.BlockSpec((tm, in_features), lambda i: (i, 0)),
            # Constant index_map -> weights/bias DMA'd once, VMEM-resident
            # across all batch tiles (single-buffering considered; re-fetch is
            # already skipped when the block index doesn't change).
            pl.BlockSpec((L, LANE, LANE), lambda i: (0, 0, 0)),
            pl.BlockSpec((L, 1, LANE), lambda i: (0, 0, 0)),
        ],
        # True-width output block (last dim == full array dim -> legal).
        out_specs=pl.BlockSpec((tm, out_features), lambda i: (i, 0)),
        compiler_params=pltpu.CompilerParams(
            dimension_semantics=("parallel",),   # megacore-shardable batch axis
        ),
    )(x32, W, Bias)

    if batch_pad != batch:
        out = out[:batch]
    return out.astype(x.dtype)


def net_forward(packed: PackedNet, x):
    return _forward_impl(
        packed.W, packed.B, x,
        in_features=packed.in_features,
        out_features=packed.out_features,
    )


# ---------------------------------------------------------------------------
# Parameter init (matches PyTorch nn.Linear default U(-1/sqrt(fan_in), ...))
# and a pure-JAX reference.
# ---------------------------------------------------------------------------
def init_net_params(key, layer_sizes=(2,), in_features=16, dtype=jnp.float32):
    params = []
    last = in_features
    for outsize in layer_sizes:
        key, wk, bk = jax.random.split(key, 3)
        bound = 1.0 / jnp.sqrt(jnp.float32(last))
        w = jax.random.uniform(wk, (outsize, last), dtype, -bound, bound)
        b = jax.random.uniform(bk, (outsize,), dtype, -bound, bound)
        params.append((w, b))
        last = outsize
    return params


def net_forward_ref(params, x):
    for (w, b) in params:
        x = jax.nn.sigmoid(x @ w.T + b)
    return x


# ---------------------------------------------------------------------------
if __name__ == "__main__":
    key = jax.random.PRNGKey(0)
    k_params, k_params2, k_x, k_x2 = jax.random.split(key, 4)

    batch, in_features = 8, 16  # nn.Linear(16, ...) => feature dim 16
    x = jax.random.normal(k_x, (batch, in_features), dtype=jnp.float32)

    # Default module config: layer_sizes=[2]; pack once at init.
    params = init_net_params(k_params, (2,), in_features)
    packed = pack_params(params, in_features)
    out = jax.block_until_ready(net_forward(packed, x))
    ref = net_forward_ref(params, x)
    assert out.shape == (batch, 2), out.shape
    assert jnp.allclose(out, ref, atol=1e-5, rtol=1e-5), "mismatch (1-layer)"

    # Deeper config to exercise the fused multi-layer path.
    params3 = init_net_params(k_params2, (8, 4, 2), in_features)
    packed3 = pack_params(params3, in_features)
    out3 = jax.block_until_ready(net_forward(packed3, x))
    ref3 = net_forward_ref(params3, x)
    assert out3.shape == (batch, 2), out3.shape
    assert jnp.allclose(out3, ref3, atol=1e-5, rtol=1e-5), "mismatch (3-layer)"

    # Larger batch to exercise the multi-step ('parallel') grid + row padding.
    xb = jax.random.normal(k_x2, (200, in_features), dtype=jnp.float32)
    outb = jax.block_until_ready(net_forward(packed3, xb))
    refb = net_forward_ref(params3, xb)
    assert outb.shape == (200, 2), outb.shape
    assert jnp.allclose(outb, refb, atol=1e-5, rtol=1e-5), "mismatch (multi-tile)"

    print("KERNEL_OK")
</pallas_src>

<mosaic_0001>
module attributes {stable_mosaic.version = 11 : i64} {
  func.func @_fused_mlp_kernel(%arg0: i32, %arg1: memref<8x16xf32, #tpu.memory_space<vmem>>, %arg2: memref<1x128x128xf32, #tpu.memory_space<vmem>>, %arg3: memref<1x1x128xf32, #tpu.memory_space<vmem>>, %arg4: memref<8x2xf32, #tpu.memory_space<vmem>>) attributes {dimension_semantics = [#tpu.dimension_semantics<parallel>], iteration_bounds = array<i64: 1>, scalar_prefetch = 0 : i64, scratch_operands = 0 : i64, tpu.core_type = #tpu.core_type<tc>, window_params = [{transform_indices = @transform_0, window_bounds = array<i64: 8, 16>}, {pipeline_mode = #tpu.pipeline_mode<synchronous>, transform_indices = @transform_1, window_bounds = array<i64: 1, 128, 128>}, {pipeline_mode = #tpu.pipeline_mode<synchronous>, transform_indices = @transform_2, window_bounds = array<i64: 1, 1, 128>}, {transform_indices = @transform_3, window_bounds = array<i64: 8, 2>}]} {
    %c0 = arith.constant 0 : index
    %c0_0 = arith.constant 0 : index
    %0 = vector.load %arg1[%c0, %c0_0] : memref<8x16xf32, #tpu.memory_space<vmem>>, vector<8x16xf32>
    %c0_1 = arith.constant 0 : index
    %c0_2 = arith.constant 0 : index
    %c0_3 = arith.constant 0 : index
    %1 = vector.load %arg2[%c0_1, %c0_2, %c0_3] : memref<1x128x128xf32, #tpu.memory_space<vmem>>, vector<1x128x128xf32>
    %2 = vector.shape_cast %1 : vector<1x128x128xf32> to vector<128x128xf32>
    %3 = vector.extract_strided_slice %2 {offsets = [0, 0], sizes = [16, 128], strides = [1, 1]} : vector<128x128xf32> to vector<16x128xf32>
    %cst = arith.constant dense<0.000000e+00> : vector<8x128xf32>
    %4 = tpu.matmul %0, %3, %cst {dimension_numbers = #tpu.dot_dimension_numbers<[1], [0], [0], [1], [0, 0, 1, 1], [], []>} : vector<8x16xf32>, vector<16x128xf32>, vector<8x128xf32> -> vector<8x128xf32>
    %c0_4 = arith.constant 0 : index
    %c0_5 = arith.constant 0 : index
    %c0_6 = arith.constant 0 : index
    %5 = vector.load %arg3[%c0_4, %c0_5, %c0_6] : memref<1x1x128xf32, #tpu.memory_space<vmem>>, vector<1x1x128xf32>
    %6 = vector.shape_cast %5 : vector<1x1x128xf32> to vector<1x128xf32>
    %7 = vector.broadcast %6 : vector<1x128xf32> to vector<8x128xf32>
    %8 = arith.addf %4, %7 : vector<8x128xf32>
    %cst_7 = arith.constant 5.000000e-01 : f32
    %9 = vector.broadcast %cst_7 : f32 to vector<8x128xf32>
    %10 = arith.mulf %9, %8 : vector<8x128xf32>
    %11 = math.tanh %10 : vector<8x128xf32>
    %cst_8 = arith.constant 5.000000e-01 : f32
    %12 = vector.broadcast %cst_8 : f32 to vector<8x128xf32>
    %13 = arith.mulf %12, %11 : vector<8x128xf32>
    %cst_9 = arith.constant 5.000000e-01 : f32
    %14 = vector.broadcast %cst_9 : f32 to vector<8x128xf32>
    %15 = arith.addf %13, %14 : vector<8x128xf32>
    %16 = vector.extract_strided_slice %15 {offsets = [0, 0], sizes = [8, 2], strides = [1, 1]} : vector<8x128xf32> to vector<8x2xf32>
    %c0_10 = arith.constant 0 : index
    %c0_11 = arith.constant 0 : index
    %17 = vector.load %arg4[%c0_10, %c0_11] : memref<8x2xf32, #tpu.memory_space<vmem>>, vector<8x2xf32>
    tpu.vector_store %arg4[%c0_10, %c0_11], %16 {strides = array<i32>} : memref<8x2xf32, #tpu.memory_space<vmem>>, vector<8x2xf32>,
    return
  }
  func.func @transform_0(%arg0: i32) -> (i32, i32) {
    %c0_i32 = arith.constant 0 : i32
    %c0_i32_0 = arith.constant 0 : i32
    return %arg0, %c0_i32 : i32, i32
  }
  func.func @transform_1(%arg0: i32) -> (i32, i32, i32) {
    %c0_i32 = arith.constant 0 : i32
    %c0_i32_0 = arith.constant 0 : i32
    %c0_i32_1 = arith.constant 0 : i32
    %c0_i32_2 = arith.constant 0 : i32
    return %c0_i32, %c0_i32_0, %c0_i32_1 : i32, i32, i32
  }
  func.func @transform_2(%arg0: i32) -> (i32, i32, i32) {
    %c0_i32 = arith.constant 0 : i32
    %c0_i32_0 = arith.constant 0 : i32
    %c0_i32_1 = arith.constant 0 : i32
    %c0_i32_2 = arith.constant 0 : i32
    return %c0_i32, %c0_i32_0, %c0_i32_1 : i32, i32, i32
  }
  func.func @transform_3(%arg0: i32) -> (i32, i32) {
    %c0_i32 = arith.constant 0 : i32
    %c0_i32_0 = arith.constant 0 : i32
    return %arg0, %c0_i32 : i32, i32
  }
}

</mosaic_0001>

<llo_original>
// kernel: _forward_impl.1
$region0: #{_forward_impl.1}
  #allocation0 [shape = 'u32[]', space=smem, size = 0x4, offset = 0x4, fixed_abs, tag = 'smem constant byte address 0x4 - core index']
  #allocation1 [shape = 'u32[144,128]{1,0:T(1,128)}', space=vmem, size = 0x12000, scoped, tag = 'internal scratch']
  %s0 = inlined_call_operand.hbm [shape: f32[8,16], index: 0, kind: input, shape index: {}]
  %s1 = inlined_call_operand.hbm [shape: f32[1,128,128], index: 1, kind: input, shape index: {}]
  %s2 = inlined_call_operand.vmem [shape: f32[1,1,128], index: 2, kind: input, shape index: {}]
  %s3 = inlined_call_operand.vmem [shape: f32[8,2], index: 3, kind: output, shape index: {}]
  %s4 = sld [smem:[#allocation0]]
  $region30: #{_forward_impl.1} parent=0
    _
  %s6 = ssub.s32 1, %s4
  %s7 = scalar_select 0, %s6, %s4
  $region1: #{_forward_impl.1} parent=0
    #allocation2 [shape = 'u8[4096]{0}', space=vmem, size = 0x1000, scoped, tag = 'input window, operand 0, single buffered']
    #allocation3 [shape = 's32[1]{0}', space=sflag, size = 0x4, scoped, tag = 'scoped memory for _forward_impl.1']
    #allocation4 [shape = 'u8[65536]{0}', space=vmem, size = 0x10000, scoped, tag = 'input window, operand 1, single buffered']
    #allocation5 [shape = 's32[1]{0}', space=sflag, size = 0x4, scoped, tag = 'scoped memory for _forward_impl.1']
    %8 = vsyncpa [#allocation3], 0
    %9 = vsyncpa [#allocation5], 0
    // Predicated region
    $region2: #{_forward_impl.1} parent=1 // pred_check
      _
    $region3: #{_forward_impl.1} parent=1 // pred_check_branch
      %11 = sbr.rel (0) target = $region5
    $region4: #{_forward_impl.1} parent=1 // pred_region
      %s13 = ssub.s32 128, 128
      %14 = vsyncadd [#allocation3], %s13
      %s16 = sshll.u32 [#allocation2], 4
      %s17 = int_to_ptr.vmem [resolvable:$true] %s16
      %19 = dma.hbm_to_vmem [thread:$0]  %s0, 128, %s17, [#allocation3]
    $region5: #{_forward_impl.1} parent=1 // pred_fallthru
      _
    // Predicated region
    $region6: #{_forward_impl.1} parent=1 // pred_check
      _
    $region7: #{_forward_impl.1} parent=1 // pred_check_branch
      %21 = sbr.rel (0) target = $region9
    $region8: #{_forward_impl.1} parent=1 // pred_region
      %s23 = ssub.s32 2048, 2048
      %24 = vsyncadd [#allocation5], %s23
      %s25 = sshll.u32 [#allocation4], 4
      %s26 = int_to_ptr.vmem [resolvable:$true] %s25
      %31 = dma.hbm_to_vmem [thread:$0]  %s1, 2048, %s26, [#allocation5], 128, 128, 8
    $region9: #{_forward_impl.1} parent=1 // pred_fallthru
      _
    // Predicated region
    $region10: #{_forward_impl.1} parent=1 // pred_check
      _
    $region11: #{_forward_impl.1} parent=1 // pred_check_branch
      %33 = sbr.rel (0) target = $region13
    $region12: #{_forward_impl.1} parent=1 // pred_region
      _
    $region13: #{_forward_impl.1} parent=1 // pred_fallthru
      _
    // Predicated region
    $region14: #{_forward_impl.1} parent=1 // pred_check
      _
    $region15: #{_forward_impl.1} parent=1 // pred_check_branch
      %35 = sbr.rel (0) target = $region17
    $region16: #{_forward_impl.1} parent=1 // pred_region
      %36 = dma.done [#allocation3], 128
    $region17: #{_forward_impl.1} parent=1 // pred_fallthru
      _
    // Predicated region
    $region18: #{_forward_impl.1} parent=1 // pred_check
      _
    $region19: #{_forward_impl.1} parent=1 // pred_check_branch
      %38 = sbr.rel (0) target = $region21
    $region20: #{_forward_impl.1} parent=1 // pred_region
      %39 = dma.done [#allocation5], 2048
    $region21: #{_forward_impl.1} parent=1 // pred_fallthru
      _
    %v40 = vld [vmem:[#allocation2] sm:$0xff]
    %v41 = vld [vmem:[#allocation4] sm:$0xff]
    %v42 = vld [vmem:[#allocation4 + $0x8] sm:$0xff]
    %v43 = vld [vmem:[%s2] sm:$0x1]
    %v45 = vlaneseq
    %v46 = vshrl.u32 %v45, 7
    %v47 = vsub.s32 0, %v46
    %v48 = vrot.slane %v43, %v47
    %vm50 = vcmask 130048
    %v52 = vsel %vm50, %v40, 0
    %54 = vmatprep.subr.mxu0 0.0
    %55 = vmatpush1.msra.mxu0 %v41
    %56 = vmatprep.subr.mxu0 0.0
    %57 = vmatpush1.msra.mxu0 %v42
    %58 = vmatprep.subr.mxu0 0.0
    %59 = vmatpush1.msra.mxu0 0.0
    %60 = vmatprep.subr.mxu0 0.0
    %61 = vmatpush1.msra.mxu0 0.0
    %62 = vmatprep.subr.mxu0 0.0
    %63 = vmatpush1.msra.mxu0 0.0
    %64 = vmatprep.subr.mxu0 0.0
    %65 = vmatpush1.msra.mxu0 0.0
    %66 = vmatprep.subr.mxu0 0.0
    %67 = vmatpush1.msra.mxu0 0.0
    %68 = vmatprep.subr.mxu0 0.0
    %69 = vmatpush1.msra.mxu0 0.0
    %70 = vmatprep.subr.mxu0 0.0
    %71 = vmatpush1.msra.mxu0 0.0
    %72 = vmatprep.subr.mxu0 0.0
    %73 = vmatpush1.msra.mxu0 0.0
    %74 = vmatprep.subr.mxu0 0.0
    %75 = vmatpush1.msra.mxu0 0.0
    %76 = vmatprep.subr.mxu0 0.0
    %77 = vmatpush1.msra.mxu0 0.0
    %78 = vmatprep.subr.mxu0 0.0
    %79 = vmatpush1.msra.mxu0 0.0
    %80 = vmatprep.subr.mxu0 0.0
    %81 = vmatpush1.msra.mxu0 0.0
    %82 = vmatprep.subr.mxu0 0.0
    %83 = vmatpush1.msra.mxu0 0.0
    %84 = vmatprep.subr.mxu0 0.0
    %85 = vmatpush1.msra.mxu0 0.0
    %86 = vmatprep.subr.mxu0 0.0
    %87 = vmatpush1.msra.mxu0 0.0
    %88 = vmatprep.subr.mxu0 0.0
    %89 = vmatpush1.msra.mxu0 0.0
    %90 = vmatprep.subr.mxu0 0.0
    %91 = vmatpush1.msra.mxu0 0.0
    %92 = vmatprep.subr.mxu0 0.0
    %93 = vmatpush1.msra.mxu0 0.0
    %94 = vmatprep.subr.mxu0 0.0
    %95 = vmatpush1.msra.mxu0 0.0
    %96 = vmatprep.subr.mxu0 0.0
    %97 = vmatpush1.msra.mxu0 0.0
    %98 = vmatprep.subr.mxu0 0.0
    %99 = vmatpush1.msra.mxu0 0.0
    %100 = vmatprep.subr.mxu0 0.0
    %101 = vmatpush1.msra.mxu0 0.0
    %102 = vmatprep.subr.mxu0 0.0
    %103 = vmatpush1.msra.mxu0 0.0
    %104 = vmatprep.subr.mxu0 0.0
    %105 = vmatpush1.msra.mxu0 0.0
    %106 = vmatprep.subr.mxu0 0.0
    %107 = vmatpush1.msra.mxu0 0.0
    %108 = vmatprep.subr.mxu0 0.0
    %109 = vmatpush1.msra.mxu0 0.0
    %110 = vmatprep.subr.mxu0 0.0
    %111 = vmatpush1.msra.mxu0 0.0
    %112 = vmatprep.subr.mxu0 0.0
    %113 = vmatpush1.msra.mxu0 0.0
    %114 = vmatprep.subr.mxu0 0.0
    %115 = vmatpush1.msra.mxu0 0.0
    %116 = vmatprep.subr.mxu0 0.0
    %117 = vmatpush1.msra.mxu0 0.0
    %118 = vmatprep.mubr.f32.mxu0 0.0
    %119 = vmatmul.mubr.f32.gmra.mrb[0].mxu0 %v52
    %v120 = vpop.f32.mrb[0].mxu0
    %v121 = vadd.f32 %v48, %v120
    %v122 = vpop.f32.mrb[0].mxu0
    %123 = vdwg.mxu0
    %v124 = vmul.f32 %v121, 0.5
    %v125 = vtanh.pop %v124
    %v126 = vmul.f32 %v125, 0.5
    %v127 = vadd.f32 %v126, 0.5
    %vm128 = vcmask 15360
    %129 = vst.msk [vmem:[%s3] sm:$0xff] %vm128, %v127
    // Predicated region
    $region22: #{_forward_impl.1} parent=1 // pred_check
      _
    $region23: #{_forward_impl.1} parent=1 // pred_check_branch
      %131 = sbr.rel (0) target = $region25
    $region24: #{_forward_impl.1} parent=1 // pred_region
      _
    $region25: #{_forward_impl.1} parent=1 // pred_fallthru
      _
    // Predicated region
    $region26: #{_forward_impl.1} parent=1 // pred_check
      _
    $region27: #{_forward_impl.1} parent=1 // pred_check_branch
      %133 = sbr.rel (0) target = $region29
    $region28: #{_forward_impl.1} parent=1 // pred_region
      _
    $region29: #{_forward_impl.1} parent=1 // pred_fallthru
      _
    %134 = vsyncpa [#allocation3], 1
    %135 = vsyncpa [#allocation5], 1

</llo_original>
